<compile_context>
chip_gen: v7x
topology: tpu7x:2x2x1
jax: 0.10.0
libtpu: 0.0.40
codegen_flags: <defaults>
</compile_context>

<pallas_src>
import jax
import jax.numpy as jnp
from jax.experimental import pallas as pl
from jax.experimental.pallas import tpu as pltpu


_HAS_BUFFERED = hasattr(pl, "Buffered")


# ---------------------------------------------------------------------------
# Kernels
# ---------------------------------------------------------------------------

def _ffnn_kernel(x_ref, w1_ref, b1_ref, w2_ref, b2_ref, o_ref):
    """Fused fc1 -> ReLU -> fc2, full hidden dim resident (grid over batch)."""
    # Cast the x tile in-kernel (hidden under the MXU); x stays in its stored
    # dtype in HBM so there is no extra wrapper-side read/write of x.
    h = jnp.dot(x_ref[...].astype(w1_ref.dtype), w1_ref[...],
                preferred_element_type=jnp.float32)
    # bias + ReLU in f32 on the VPU, immediately downcast to the fc2 operand
    # dtype so the intermediate feeding the second MXU op is narrow.
    h = jnp.maximum(h + b1_ref[...], 0.0).astype(w2_ref.dtype)
    y = jnp.dot(h, w2_ref[...], preferred_element_type=jnp.float32)
    o_ref[...] = (y + b2_ref[...]).astype(o_ref.dtype)


def _ffnn_kernel_hsplit(x_ref, w1_ref, b1_ref, w2_ref, b2_ref, o_ref, acc_ref):
    """Hidden-dim-split variant: grid axis 1 walks H blocks, f32 accumulator.

    Valid because ReLU is elementwise over H:
        y = sum_k relu(x @ W1[:, k] + b1[k]) @ W2[k, :]
    """
    k = pl.program_id(1)

    @pl.when(k == 0)
    def _():
        acc_ref[...] = jnp.zeros_like(acc_ref)

    h = jnp.dot(x_ref[...].astype(w1_ref.dtype), w1_ref[...],
                preferred_element_type=jnp.float32)
    h = jnp.maximum(h + b1_ref[...], 0.0).astype(w2_ref.dtype)
    acc_ref[...] += jnp.dot(h, w2_ref[...], preferred_element_type=jnp.float32)

    @pl.when(k == pl.num_programs(1) - 1)
    def _():
        o_ref[...] = (acc_ref[...] + b2_ref[...]).astype(o_ref.dtype)


# ---------------------------------------------------------------------------
# Host-side helpers
# ---------------------------------------------------------------------------

def _round_up(n, m):
    return ((n + m - 1) // m) * m


def _vmem_capacity_bytes():
    """Per-core VMEM capacity; conservative 64 MiB (v7x) fallback."""
    try:  # narrow, well-understood fallback: only guards the hardware query
        info = pltpu.get_tpu_info()
        cap = getattr(info, "vmem_capacity_bytes", None)
        if cap:
            return int(cap)
    except Exception:
        pass
    return 64 << 20


def _pick_block_b(B, In, H, O_pad, x_itemsize, out_itemsize):
    """Batch tile from a streaming-bytes target, not a fixed cap."""
    per_row_stream = In * x_itemsize + O_pad * out_itemsize
    rows_stream = (2 << 20) // max(per_row_stream, 1)      # ~2 MiB x+out per step
    rows_h = (8 << 20) // max(H * 4, 1)                    # keep f32 h under ~8 MiB
    rows = max(256, min(1024, rows_stream, rows_h))
    if rows >= 256:                                         # MXU-friendly M multiple
        rows = (rows // 256) * 256
    rows = max(8, (rows // 8) * 8)
    return B if B <= rows else rows                         # small batch -> one tile


def _pick_block_h(H, In, O_pad, w_itemsize, weight_budget_bytes):
    """Largest multiple-of-128 divisor of H whose W1+W2 slabs fit the budget."""
    def weight_bytes(bh):
        return (In * bh + bh * O_pad) * w_itemsize + (bh + O_pad) * 4
    if weight_bytes(H) <= weight_budget_bytes or H % 128 != 0:
        return H
    for bh in range(H, 0, -128):
        if H % bh == 0 and weight_bytes(bh) <= weight_budget_bytes:
            return bh
    return 128


def prepare_ffnn_params(w1, b1, w2, b2, operand_dtype=None):
    """One-time parameter prep (do NOT redo per forward call).

    w1: (In, H), w2: (H, O) -- i.e. nn.Linear.weight pre-transposed to
    [in, out]. Pads O to a 128-lane multiple (lane-dense output stores),
    reshapes biases to f32 rows, and optionally casts weights to a reduced MXU
    operand dtype (bf16 recommended on v5e/v6e/v7x; accumulation is always f32).
    """
    In, H = w1.shape
    O = w2.shape[1]
    O_pad = _round_up(max(O, 1), 128)
    if O_pad != O:
        w2 = jnp.pad(w2, ((0, 0), (0, O_pad - O)))
        b2 = jnp.pad(b2, ((0, O_pad - O),))
    b1_2d = b1.astype(jnp.float32).reshape(1, H)
    b2_2d = b2.astype(jnp.float32).reshape(1, O_pad)
    if operand_dtype is not None:
        w1 = w1.astype(operand_dtype)
        w2 = w2.astype(operand_dtype)
    return {"w1": w1, "b1": b1_2d, "w2": w2, "b2": b2_2d,
            "In": In, "H": H, "O": O, "O_pad": O_pad}


def _build_call(*, B, In, H, O_pad, block_b, block_h, out_dtype, x_dtype,
                w_dtype, vmem_limit, batch_parallel, single_buffer_weights):
    n_b = pl.cdiv(B, block_b)
    n_h = pl.cdiv(H, block_h)
    wmode = pl.Buffered(1) if single_buffer_weights else None
    batch_sem = "parallel" if batch_parallel else "arbitrary"

    x_bytes = jnp.dtype(x_dtype).itemsize
    w_bytes = jnp.dtype(w_dtype).itemsize
    o_bytes = jnp.dtype(out_dtype).itemsize
    # Advisory only: flops include the O_pad zero columns (the MXU really does
    # them); resident weights counted once.
    cost = pl.CostEstimate(
        flops=int(2 * B * In * H + 2 * B * H * O_pad),
        transcendentals=0,
        bytes_accessed=int(B * In * x_bytes
                           + (In * H + H * O_pad) * w_bytes
                           + (H + O_pad) * 4
                           + B * O_pad * o_bytes))

    if n_h == 1:
        grid = (n_b,)
        in_specs = [
            pl.BlockSpec((block_b, In), lambda i: (i, 0)),                    # x tile
            pl.BlockSpec((In, H), lambda i: (0, 0), pipeline_mode=wmode),     # W1 resident
            pl.BlockSpec((1, H), lambda i: (0, 0), pipeline_mode=wmode),      # b1
            pl.BlockSpec((H, O_pad), lambda i: (0, 0), pipeline_mode=wmode),  # W2 resident
            pl.BlockSpec((1, O_pad), lambda i: (0, 0), pipeline_mode=wmode),  # b2
        ]
        out_specs = pl.BlockSpec((block_b, O_pad), lambda i: (i, 0))
        scratch_shapes = []
        kernel = _ffnn_kernel
        dims = (batch_sem,)
    else:
        grid = (n_b, n_h)
        in_specs = [
            pl.BlockSpec((block_b, In), lambda i, k: (i, 0)),                 # x tile (k-invariant)
            pl.BlockSpec((In, block_h), lambda i, k: (0, k)),                 # W1 column block
            pl.BlockSpec((1, block_h), lambda i, k: (0, k)),                  # b1 block
            pl.BlockSpec((block_h, O_pad), lambda i, k: (k, 0)),              # W2 row block
            pl.BlockSpec((1, O_pad), lambda i, k: (0, 0), pipeline_mode=wmode),
        ]
        out_specs = pl.BlockSpec((block_b, O_pad), lambda i, k: (i, 0))
        scratch_shapes = [pltpu.VMEM((block_b, O_pad), jnp.float32)]
        kernel = _ffnn_kernel_hsplit
        dims = (batch_sem, "arbitrary")

    return pl.pallas_call(
        kernel,
        out_shape=jax.ShapeDtypeStruct((B, O_pad), out_dtype),
        grid_spec=pltpu.PrefetchScalarGridSpec(
            num_scalar_prefetch=0,
            grid=grid,
            in_specs=in_specs,
            out_specs=out_specs,
            scratch_shapes=scratch_shapes),
        compiler_params=pltpu.CompilerParams(
            dimension_semantics=dims,
            vmem_limit_bytes=int(vmem_limit)),
        cost_estimate=cost,
    )


def ffnn_forward(x, params, *, block_b=None, block_h=None):
    """x: (B, In) in its stored dtype; params from prepare_ffnn_params()."""
    B, In = x.shape
    if In != params["In"]:
        raise ValueError(f"x has {In} features, params expect {params['In']}")
    H, O, O_pad = params["H"], params["O"], params["O_pad"]
    w1, b1, w2, b2 = params["w1"], params["b1"], params["w2"], params["b2"]
    out_dtype = x.dtype

    x_itemsize = jnp.dtype(x.dtype).itemsize
    w_itemsize = jnp.dtype(w1.dtype).itemsize
    out_itemsize = jnp.dtype(out_dtype).itemsize

    vmem_cap = _vmem_capacity_bytes()
    vmem_ceiling = int(vmem_cap * 0.85)   # leave headroom for Mosaic scratch

    # --- batch tile ---------------------------------------------------------
    if block_b is None:
        block_b = _pick_block_b(B, In, H, O_pad, x_itemsize, out_itemsize)
    else:
        block_b = min(block_b, B)
        if block_b < B:
            mult = 16 if x_itemsize < 4 else 8      # sublane packing multiple
            block_b = max(mult, (block_b // mult) * mult)

    # --- hidden tile (only split when weights would not stay resident) ------
    if block_h is None:
        block_h = _pick_block_h(H, In, O_pad, w_itemsize, vmem_cap // 2)
    if block_h != H:
        if H % block_h != 0 or block_h % 128 != 0:
            raise ValueError("block_h must divide H and be a multiple of 128")

    n_b = pl.cdiv(B, block_b)
    n_h = pl.cdiv(H, block_h)

    # --- VMEM budget ---------------------------------------------------------
    wbuf = 1 if (n_h == 1 and _HAS_BUFFERED) else 2
    needed = (wbuf * ((In * block_h + block_h * O_pad) * w_itemsize
                      + (block_h + O_pad) * 4)
              + 2 * block_b * (In * x_itemsize + O_pad * out_itemsize)
              + block_b * (block_h + O_pad) * 4)
    vmem_limit = min(max(32 << 20, int(1.5 * needed) + (4 << 20)), vmem_ceiling)

    # Megacore sharding only pays when the batch grid is long enough that
    # duplicating the weight stream per TC is amortized.
    batch_parallel = n_b >= 8

    build = lambda sbw: _build_call(
        B=B, In=In, H=H, O_pad=O_pad, block_b=block_b, block_h=block_h,
        out_dtype=out_dtype, x_dtype=x.dtype, w_dtype=w1.dtype,
        vmem_limit=vmem_limit, batch_parallel=batch_parallel,
        single_buffer_weights=sbw)

    args = (x, w1, b1, w2, b2)
    try:
        out = build(_HAS_BUFFERED)(*args)
    except Exception as e:
        # Only retry without single-buffered weights if the failure is about
        # the pipeline_mode / Buffered feature itself; never mask real errors.
        msg = repr(e)
        if _HAS_BUFFERED and any(s in msg for s in
                                 ("Buffered", "buffer_count", "pipeline_mode")):
            out = build(False)(*args)
        else:
            raise
    return out[:, :O]


def ffnn_reference(x, w1, b1, w2, b2):
    hp = jax.lax.Precision.HIGHEST
    h = jnp.maximum(jnp.dot(x, w1, precision=hp) + b1, 0.0)
    return jnp.dot(h, w2, precision=hp) + b2


# ---------------------------------------------------------------------------
# Demo / self-test
# ---------------------------------------------------------------------------

if __name__ == "__main__":
    # Shapes consistent with the module: hidden_size=512, output_size=1;
    # small batch / input feature count for the demo.
    batch, input_size, hidden_size, output_size = 32, 16, 512, 1

    key = jax.random.PRNGKey(0)
    kx, k1, kb1, k2, kb2 = jax.random.split(key, 5)

    x = jax.random.normal(kx, (batch, input_size), dtype=jnp.float32)

    # Deterministic init mimicking nn.Linear's uniform(-1/sqrt(fan_in), ...).
    bound1 = 1.0 / (input_size ** 0.5)
    bound2 = 1.0 / (hidden_size ** 0.5)
    # Stored pre-transposed: (in_features, out_features).
    w1 = jax.random.uniform(k1, (input_size, hidden_size), jnp.float32, -bound1, bound1)
    b1 = jax.random.uniform(kb1, (hidden_size,), jnp.float32, -bound1, bound1)
    w2 = jax.random.uniform(k2, (hidden_size, output_size), jnp.float32, -bound2, bound2)
    b2 = jax.random.uniform(kb2, (output_size,), jnp.float32, -bound2, bound2)

    ref = ffnn_reference(x, w1, b1, w2, b2)

    # 1) f32 path, default tiling: single grid step at this batch size.
    params_f32 = prepare_ffnn_params(w1, b1, w2, b2)
    out = jax.block_until_ready(ffnn_forward(x, params_f32))
    assert out.shape == (batch, output_size)
    assert jnp.allclose(out, ref, atol=1e-4, rtol=1e-4), "f32 mismatch vs reference"

    # 2) bf16 weight/operand path (f32 accumulation), looser tolerance.
    params_bf16 = prepare_ffnn_params(w1, b1, w2, b2, operand_dtype=jnp.bfloat16)
    out_bf16 = jax.block_until_ready(ffnn_forward(x, params_bf16))
    assert out_bf16.shape == (batch, output_size)
    assert jnp.allclose(out_bf16, ref, atol=5e-2, rtol=5e-2), "bf16 mismatch vs reference"

    # 3) Hidden-dim-split path (chosen automatically when W1+W2 would not fit
    #    the per-core VMEM budget, e.g. large H on v7x); forced here for
    #    correctness coverage.
    out_split = jax.block_until_ready(ffnn_forward(x, params_f32, block_h=128))
    assert out_split.shape == (batch, output_size)
    assert jnp.allclose(out_split, ref, atol=1e-4, rtol=1e-4), "H-split mismatch vs reference"

    print("KERNEL_OK")
</pallas_src>

<mosaic_0001>
module attributes {stable_mosaic.version = 11 : i64} {
  func.func @_ffnn_kernel(%arg0: i32, %arg1: memref<32x16xf32, #tpu.memory_space<vmem>>, %arg2: memref<16x512xf32, #tpu.memory_space<vmem>>, %arg3: memref<1x512xf32, #tpu.memory_space<vmem>>, %arg4: memref<512x128xf32, #tpu.memory_space<vmem>>, %arg5: memref<1x128xf32, #tpu.memory_space<vmem>>, %arg6: memref<32x128xf32, #tpu.memory_space<vmem>>) attributes {dimension_semantics = [#tpu.dimension_semantics<arbitrary>], iteration_bounds = array<i64: 1>, scalar_prefetch = 0 : i64, scratch_operands = 0 : i64, tpu.core_type = #tpu.core_type<tc>, window_params = [{transform_indices = @transform_0, window_bounds = array<i64: 32, 16>}, {pipeline_mode = #tpu.pipeline_mode<synchronous>, transform_indices = @transform_1, window_bounds = array<i64: 16, 512>}, {pipeline_mode = #tpu.pipeline_mode<synchronous>, transform_indices = @transform_2, window_bounds = array<i64: 1, 512>}, {pipeline_mode = #tpu.pipeline_mode<synchronous>, transform_indices = @transform_3, window_bounds = array<i64: 512, 128>}, {pipeline_mode = #tpu.pipeline_mode<synchronous>, transform_indices = @transform_4, window_bounds = array<i64: 1, 128>}, {transform_indices = @transform_5, window_bounds = array<i64: 32, 128>}]} {
    %c0 = arith.constant 0 : index
    %c0_0 = arith.constant 0 : index
    %0 = vector.load %arg1[%c0, %c0_0] : memref<32x16xf32, #tpu.memory_space<vmem>>, vector<32x16xf32>
    %c0_1 = arith.constant 0 : index
    %c0_2 = arith.constant 0 : index
    %1 = vector.load %arg2[%c0_1, %c0_2] : memref<16x512xf32, #tpu.memory_space<vmem>>, vector<16x512xf32>
    %cst = arith.constant dense<0.000000e+00> : vector<32x512xf32>
    %2 = tpu.matmul %0, %1, %cst {dimension_numbers = #tpu.dot_dimension_numbers<[1], [0], [0], [1], [0, 0, 1, 1], [], []>} : vector<32x16xf32>, vector<16x512xf32>, vector<32x512xf32> -> vector<32x512xf32>
    %c0_3 = arith.constant 0 : index
    %c0_4 = arith.constant 0 : index
    %3 = vector.load %arg3[%c0_3, %c0_4] : memref<1x512xf32, #tpu.memory_space<vmem>>, vector<1x512xf32>
    %4 = vector.broadcast %3 : vector<1x512xf32> to vector<32x512xf32>
    %5 = arith.addf %2, %4 : vector<32x512xf32>
    %cst_5 = arith.constant 0.000000e+00 : f32
    %6 = vector.broadcast %cst_5 : f32 to vector<32x512xf32>
    %7 = arith.maximumf %5, %6 : vector<32x512xf32>
    %c0_6 = arith.constant 0 : index
    %c0_7 = arith.constant 0 : index
    %8 = vector.load %arg4[%c0_6, %c0_7] : memref<512x128xf32, #tpu.memory_space<vmem>>, vector<512x128xf32>
    %cst_8 = arith.constant dense<0.000000e+00> : vector<32x128xf32>
    %9 = tpu.matmul %7, %8, %cst_8 {dimension_numbers = #tpu.dot_dimension_numbers<[1], [0], [0], [1], [0, 0, 1, 1], [], []>} : vector<32x512xf32>, vector<512x128xf32>, vector<32x128xf32> -> vector<32x128xf32>
    %c0_9 = arith.constant 0 : index
    %c0_10 = arith.constant 0 : index
    %10 = vector.load %arg5[%c0_9, %c0_10] : memref<1x128xf32, #tpu.memory_space<vmem>>, vector<1x128xf32>
    %11 = vector.broadcast %10 : vector<1x128xf32> to vector<32x128xf32>
    %12 = arith.addf %9, %11 : vector<32x128xf32>
    %c0_11 = arith.constant 0 : index
    %c0_12 = arith.constant 0 : index
    %13 = vector.load %arg6[%c0_11, %c0_12] : memref<32x128xf32, #tpu.memory_space<vmem>>, vector<32x128xf32>
    tpu.vector_store %arg6[%c0_11, %c0_12], %12 {strides = array<i32>} : memref<32x128xf32, #tpu.memory_space<vmem>>, vector<32x128xf32>,
    return
  }
  func.func @transform_0(%arg0: i32) -> (i32, i32) {
    %c0_i32 = arith.constant 0 : i32
    %c0_i32_0 = arith.constant 0 : i32
    return %arg0, %c0_i32 : i32, i32
  }
  func.func @transform_1(%arg0: i32) -> (i32, i32) {
    %c0_i32 = arith.constant 0 : i32
    %c0_i32_0 = arith.constant 0 : i32
    %c0_i32_1 = arith.constant 0 : i32
    return %c0_i32, %c0_i32_0 : i32, i32
  }
  func.func @transform_2(%arg0: i32) -> (i32, i32) {
    %c0_i32 = arith.constant 0 : i32
    %c0_i32_0 = arith.constant 0 : i32
    %c0_i32_1 = arith.constant 0 : i32
    return %c0_i32, %c0_i32_0 : i32, i32
  }
  func.func @transform_3(%arg0: i32) -> (i32, i32) {
    %c0_i32 = arith.constant 0 : i32
    %c0_i32_0 = arith.constant 0 : i32
    %c0_i32_1 = arith.constant 0 : i32
    return %c0_i32, %c0_i32_0 : i32, i32
  }
  func.func @transform_4(%arg0: i32) -> (i32, i32) {
    %c0_i32 = arith.constant 0 : i32
    %c0_i32_0 = arith.constant 0 : i32
    %c0_i32_1 = arith.constant 0 : i32
    return %c0_i32, %c0_i32_0 : i32, i32
  }
  func.func @transform_5(%arg0: i32) -> (i32, i32) {
    %c0_i32 = arith.constant 0 : i32
    %c0_i32_0 = arith.constant 0 : i32
    return %arg0, %c0_i32 : i32, i32
  }
}

</mosaic_0001>

<llo_original>
// kernel: tpu_custom_call.1
$region0: #{tpu_custom_call.1}
  #allocation0 [shape = 'u32[]', space=smem, size = 0x4, offset = 0x4, fixed_abs, tag = 'smem constant byte address 0x4 - core index']
  #allocation1 [shape = 'u32[144,128]{1,0:T(1,128)}', space=vmem, size = 0x12000, scoped, tag = 'internal scratch']
  %s0 = inlined_call_operand.vmem [shape: f32[32,16], index: 0, kind: input, shape index: {}]
  %s1 = inlined_call_operand.hbm [shape: f32[16,512], index: 1, kind: input, shape index: {}]
  %s2 = inlined_call_operand.vmem [shape: f32[1,512], index: 2, kind: input, shape index: {}]
  %s3 = inlined_call_operand.hbm [shape: f32[512,128], index: 3, kind: input, shape index: {}]
  %s4 = inlined_call_operand.vmem [shape: f32[1,128], index: 4, kind: input, shape index: {}]
  %s5 = inlined_call_operand.hbm [shape: f32[32,128], index: 5, kind: output, shape index: {}]
  %s6 = sld [smem:[#allocation0]]
  $region38: #{tpu_custom_call.1} parent=0
    _
  %s8 = ssub.s32 1, %s6
  %s9 = scalar_select 0, %s8, %s6
  $region1: #{tpu_custom_call.1} parent=0
    #allocation2 [shape = 'u8[32768]{0}', space=vmem, size = 0x8000, scoped, tag = 'input window, operand 1, single buffered']
    #allocation3 [shape = 's32[1]{0}', space=sflag, size = 0x4, scoped, tag = 'scoped memory for tpu_custom_call.1']
    #allocation4 [shape = 's32[1]{0}', space=sflag, size = 0x4, scoped, tag = 'scoped memory for tpu_custom_call.1']
    #allocation5 [shape = 'u8[262144]{0}', space=vmem, size = 0x40000, scoped, tag = 'input window, operand 3, single buffered']
    #allocation6 [shape = 's32[1]{0}', space=sflag, size = 0x4, scoped, tag = 'scoped memory for tpu_custom_call.1']
    #allocation7 [shape = 'u8[16384]{0}', space=vmem, size = 0x4000, scoped, tag = 'output window, operand 0, single buffered']
    %10 = vsyncpa [#allocation3], 0
    %11 = vsyncpa [#allocation6], 0
    %12 = vsyncpa [#allocation4], 0
    // Predicated region
    $region2: #{tpu_custom_call.1} parent=1 // pred_check
      _
    $region3: #{tpu_custom_call.1} parent=1 // pred_check_branch
      %14 = sbr.rel (0) target = $region5
    $region4: #{tpu_custom_call.1} parent=1 // pred_region
      _
    $region5: #{tpu_custom_call.1} parent=1 // pred_fallthru
      _
    // Predicated region
    $region6: #{tpu_custom_call.1} parent=1 // pred_check
      _
    $region7: #{tpu_custom_call.1} parent=1 // pred_check_branch
      %16 = sbr.rel (0) target = $region9
    $region8: #{tpu_custom_call.1} parent=1 // pred_region
      %s18 = ssub.s32 1024, 1024
      %19 = vsyncadd [#allocation3], %s18
      %s20 = sshll.u32 [#allocation2], 4
      %s21 = int_to_ptr.vmem [resolvable:$true] %s20
      %26 = dma.hbm_to_vmem [thread:$0]  %s1, 1024, %s21, [#allocation3], 512, 512, 32
    $region9: #{tpu_custom_call.1} parent=1 // pred_fallthru
      _
    // Predicated region
    $region10: #{tpu_custom_call.1} parent=1 // pred_check
      _
    $region11: #{tpu_custom_call.1} parent=1 // pred_check_branch
      %28 = sbr.rel (0) target = $region13
    $region12: #{tpu_custom_call.1} parent=1 // pred_region
      _
    $region13: #{tpu_custom_call.1} parent=1 // pred_fallthru
      _
    // Predicated region
    $region14: #{tpu_custom_call.1} parent=1 // pred_check
      _
    $region15: #{tpu_custom_call.1} parent=1 // pred_check_branch
      %30 = sbr.rel (0) target = $region17
    $region16: #{tpu_custom_call.1} parent=1 // pred_region
      %s32 = ssub.s32 8192, 8192
      %33 = vsyncadd [#allocation6], %s32
      %s34 = sshll.u32 [#allocation5], 4
      %s35 = int_to_ptr.vmem [resolvable:$true] %s34
      %40 = dma.hbm_to_vmem [thread:$0]  %s3, 8192, %s35, [#allocation6], 128, 128, 8
    $region17: #{tpu_custom_call.1} parent=1 // pred_fallthru
      _
    // Predicated region
    $region18: #{tpu_custom_call.1} parent=1 // pred_check
      _
    $region19: #{tpu_custom_call.1} parent=1 // pred_check_branch
      %42 = sbr.rel (0) target = $region21
    $region20: #{tpu_custom_call.1} parent=1 // pred_region
      _
    $region21: #{tpu_custom_call.1} parent=1 // pred_fallthru
      _
    // Predicated region
    $region22: #{tpu_custom_call.1} parent=1 // pred_check
      _
    $region23: #{tpu_custom_call.1} parent=1 // pred_check_branch
      %44 = sbr.rel (0) target = $region25
    $region24: #{tpu_custom_call.1} parent=1 // pred_region
      %45 = dma.done [#allocation3], 1024
    $region25: #{tpu_custom_call.1} parent=1 // pred_fallthru
      _
    // Predicated region
    $region26: #{tpu_custom_call.1} parent=1 // pred_check
      _
    $region27: #{tpu_custom_call.1} parent=1 // pred_check_branch
      %47 = sbr.rel (0) target = $region29
    $region28: #{tpu_custom_call.1} parent=1 // pred_region
      %48 = dma.done [#allocation6], 8192
    $region29: #{tpu_custom_call.1} parent=1 // pred_fallthru
      _
    %v49 = vld [vmem:[%s0] sm:$0xff]
    %v50 = vld [vmem:[%s0 + $0x8] sm:$0xff]
    %v51 = vld [vmem:[%s0 + $0x10] sm:$0xff]
    %v52 = vld [vmem:[%s0 + $0x18] sm:$0xff]
    %v53 = vld [vmem:[#allocation2] sm:$0xff]
    %v54 = vld [vmem:[#allocation2 + $0x8] sm:$0xff]
    %v55 = vld [vmem:[#allocation2 + $0x10] sm:$0xff]
    %v56 = vld [vmem:[#allocation2 + $0x18] sm:$0xff]
    %v57 = vld [vmem:[#allocation2 + $0x20] sm:$0xff]
    %v58 = vld [vmem:[#allocation2 + $0x28] sm:$0xff]
    %v59 = vld [vmem:[#allocation2 + $0x30] sm:$0xff]
    %v60 = vld [vmem:[#allocation2 + $0x38] sm:$0xff]
    %v61 = vld [vmem:[%s2] sm:$0xf]
    %v63 = vlaneseq
    %v64 = vshrl.u32 %v63, 7
    %v65 = vsub.s32 0, %v64
    %v66 = vrot.slane %v61, %v65
    %v67 = vlaneseq
    %v68 = vshrl.u32 %v67, 7
    %v69 = vsub.s32 1, %v68
    %v70 = vrot.slane %v61, %v69
    %v71 = vlaneseq
    %v72 = vshrl.u32 %v71, 7
    %v73 = vsub.s32 2, %v72
    %v74 = vrot.slane %v61, %v73
    %v75 = vlaneseq
    %v76 = vshrl.u32 %v75, 7
    %v77 = vsub.s32 3, %v76
    %v78 = vrot.slane %v61, %v77
    %vm83 = vcmask 130048
    %v85 = vsel %vm83, %v49, 0
    %v88 = vsel %vm83, %v50, 0
    %v91 = vsel %vm83, %v51, 0
    %v94 = vsel %vm83, %v52, 0
    %96 = vmatprep.subr.mxu0 %v54
    %97 = vmatpush1.msra.mxu0 %v53
    %98 = vmatprep.subr.mxu0 %v58
    %99 = vmatpush1.msra.mxu0 %v57
    %100 = vmatprep.subr.mxu0 0.0
    %101 = vmatpush1.msra.mxu0 0.0
    %102 = vmatprep.subr.mxu0 0.0
    %103 = vmatpush1.msra.mxu0 0.0
    %104 = vmatprep.subr.mxu0 0.0
    %105 = vmatpush1.msra.mxu0 0.0
    %106 = vmatprep.subr.mxu0 0.0
    %107 = vmatpush1.msra.mxu0 0.0
    %108 = vmatprep.subr.mxu0 0.0
    %109 = vmatpush1.msra.mxu0 0.0
    %110 = vmatprep.subr.mxu0 0.0
    %111 = vmatpush1.msra.mxu0 0.0
    %112 = vmatprep.subr.mxu0 0.0
    %113 = vmatpush1.msra.mxu0 0.0
    %114 = vmatprep.subr.mxu0 0.0
    %115 = vmatpush1.msra.mxu0 0.0
    %116 = vmatprep.subr.mxu0 0.0
    %117 = vmatpush1.msra.mxu0 0.0
    %118 = vmatprep.subr.mxu0 0.0
    %119 = vmatpush1.msra.mxu0 0.0
    %120 = vmatprep.subr.mxu0 0.0
    %121 = vmatpush1.msra.mxu0 0.0
    %122 = vmatprep.subr.mxu0 0.0
    %123 = vmatpush1.msra.mxu0 0.0
    %124 = vmatprep.subr.mxu0 0.0
    %125 = vmatpush1.msra.mxu0 0.0
    %126 = vmatprep.subr.mxu0 0.0
    %127 = vmatpush1.msra.mxu0 0.0
    %128 = vmatprep.subr.mxu0 0.0
    %129 = vmatpush1.msra.mxu0 0.0
    %130 = vmatprep.subr.mxu0 0.0
    %131 = vmatpush1.msra.mxu0 0.0
    %132 = vmatprep.subr.mxu0 0.0
    %133 = vmatpush1.msra.mxu0 0.0
    %134 = vmatprep.subr.mxu0 0.0
    %135 = vmatpush1.msra.mxu0 0.0
    %136 = vmatprep.subr.mxu0 0.0
    %137 = vmatpush1.msra.mxu0 0.0
    %138 = vmatprep.subr.mxu0 0.0
    %139 = vmatpush1.msra.mxu0 0.0
    %140 = vmatprep.subr.mxu0 0.0
    %141 = vmatpush1.msra.mxu0 0.0
    %142 = vmatprep.subr.mxu0 0.0
    %143 = vmatpush1.msra.mxu0 0.0
    %144 = vmatprep.subr.mxu0 0.0
    %145 = vmatpush1.msra.mxu0 0.0
    %146 = vmatprep.subr.mxu0 0.0
    %147 = vmatpush1.msra.mxu0 0.0
    %148 = vmatprep.subr.mxu0 0.0
    %149 = vmatpush1.msra.mxu0 0.0
    %150 = vmatprep.subr.mxu0 0.0
    %151 = vmatpush1.msra.mxu0 0.0
    %152 = vmatprep.subr.mxu0 0.0
    %153 = vmatpush1.msra.mxu0 0.0
    %154 = vmatprep.subr.mxu0 0.0
    %155 = vmatpush1.msra.mxu0 0.0
    %156 = vmatprep.subr.mxu0 0.0
    %157 = vmatpush1.msra.mxu0 0.0
    %158 = vmatprep.subr.mxu0 0.0
    %159 = vmatpush1.msra.mxu0 0.0
    %160 = vmatprep.mubr.f32.mxu0 0.0
    %161 = vmatmul.mubr.f32.gmra.mrb[0].mxu0 %v85
    %v162 = vpop.f32.mrb[0].mxu0
    %v163 = vadd.f32 %v66, %v162
    %v164 = vpop.f32.mrb[0].mxu0
    %v165 = vadd.f32 %v70, %v164
    %166 = vmatprep.mubr.f32.mxu0 0.0
    %167 = vmatmul.mubr.f32.gmra.mrb[0].mxu0 %v88
    %v168 = vpop.f32.mrb[0].mxu0
    %v169 = vadd.f32 %v66, %v168
    %v170 = vpop.f32.mrb[0].mxu0
    %v171 = vadd.f32 %v70, %v170
    %172 = vmatprep.mubr.f32.mxu0 0.0
    %173 = vmatmul.mubr.f32.gmra.mrb[0].mxu0 %v91
    %v174 = vpop.f32.mrb[0].mxu0
    %v175 = vadd.f32 %v66, %v174
    %v176 = vpop.f32.mrb[0].mxu0
    %v177 = vadd.f32 %v70, %v176
    %178 = vmatprep.mubr.f32.mxu0 0.0
    %179 = vmatmul.mubr.f32.gmra.mrb[0].mxu0 %v94
    %v180 = vpop.f32.mrb[0].mxu0
    %v181 = vadd.f32 %v66, %v180
    %v182 = vpop.f32.mrb[0].mxu0
    %v183 = vadd.f32 %v70, %v182
    %184 = vdwg.mxu0
    %185 = vmatprep.subr.mxu0 %v56
    %186 = vmatpush1.msra.mxu0 %v55
    %187 = vmatprep.subr.mxu0 %v60
    %188 = vmatpush1.msra.mxu0 %v59
    %189 = vmatprep.subr.mxu0 0.0
    %190 = vmatpush1.msra.mxu0 0.0
    %191 = vmatprep.subr.mxu0 0.0
    %192 = vmatpush1.msra.mxu0 0.0
    %193 = vmatprep.subr.mxu0 0.0
    %194 = vmatpush1.msra.mxu0 0.0
    %195 = vmatprep.subr.mxu0 0.0
    %196 = vmatpush1.msra.mxu0 0.0
    %197 = vmatprep.subr.mxu0 0.0
    %198 = vmatpush1.msra.mxu0 0.0
    %199 = vmatprep.subr.mxu0 0.0
    %200 = vmatpush1.msra.mxu0 0.0
    %201 = vmatprep.subr.mxu0 0.0
    %202 = vmatpush1.msra.mxu0 0.0
    %203 = vmatprep.subr.mxu0 0.0
    %204 = vmatpush1.msra.mxu0 0.0
    %205 = vmatprep.subr.mxu0 0.0
    %206 = vmatpush1.msra.mxu0 0.0
    %207 = vmatprep.subr.mxu0 0.0
    %208 = vmatpush1.msra.mxu0 0.0
    %209 = vmatprep.subr.mxu0 0.0
    %210 = vmatpush1.msra.mxu0 0.0
    %211 = vmatprep.subr.mxu0 0.0
    %212 = vmatpush1.msra.mxu0 0.0
    %213 = vmatprep.subr.mxu0 0.0
    %214 = vmatpush1.msra.mxu0 0.0
    %215 = vmatprep.subr.mxu0 0.0
    %216 = vmatpush1.msra.mxu0 0.0
    %217 = vmatprep.subr.mxu0 0.0
    %218 = vmatpush1.msra.mxu0 0.0
    %219 = vmatprep.subr.mxu0 0.0
    %220 = vmatpush1.msra.mxu0 0.0
    %221 = vmatprep.subr.mxu0 0.0
    %222 = vmatpush1.msra.mxu0 0.0
    %223 = vmatprep.subr.mxu0 0.0
    %224 = vmatpush1.msra.mxu0 0.0
    %225 = vmatprep.subr.mxu0 0.0
    %226 = vmatpush1.msra.mxu0 0.0
    %227 = vmatprep.subr.mxu0 0.0
    %228 = vmatpush1.msra.mxu0 0.0
    %229 = vmatprep.subr.mxu0 0.0
    %230 = vmatpush1.msra.mxu0 0.0
    %231 = vmatprep.subr.mxu0 0.0
    %232 = vmatpush1.msra.mxu0 0.0
    %233 = vmatprep.subr.mxu0 0.0
    %234 = vmatpush1.msra.mxu0 0.0
    %235 = vmatprep.subr.mxu0 0.0
    %236 = vmatpush1.msra.mxu0 0.0
    %237 = vmatprep.subr.mxu0 0.0
    %238 = vmatpush1.msra.mxu0 0.0
    %239 = vmatprep.subr.mxu0 0.0
    %240 = vmatpush1.msra.mxu0 0.0
    %241 = vmatprep.subr.mxu0 0.0
    %242 = vmatpush1.msra.mxu0 0.0
    %243 = vmatprep.subr.mxu0 0.0
    %244 = vmatpush1.msra.mxu0 0.0
    %245 = vmatprep.subr.mxu0 0.0
    %246 = vmatpush1.msra.mxu0 0.0
    %247 = vmatprep.subr.mxu0 0.0
    %248 = vmatpush1.msra.mxu0 0.0
    %249 = vmatprep.mubr.f32.mxu0 0.0
    %250 = vmatmul.mubr.f32.gmra.mrb[0].mxu0 %v85
    %v251 = vpop.f32.mrb[0].mxu0
    %v252 = vadd.f32 %v74, %v251
    %v253 = vpop.f32.mrb[0].mxu0
    %v254 = vadd.f32 %v78, %v253
    %255 = vmatprep.mubr.f32.mxu0 0.0
    %256 = vmatmul.mubr.f32.gmra.mrb[0].mxu0 %v88
    %v257 = vpop.f32.mrb[0].mxu0
    %v258 = vadd.f32 %v74, %v257
    %v259 = vpop.f32.mrb[0].mxu0
    %v260 = vadd.f32 %v78, %v259
    %261 = vmatprep.mubr.f32.mxu0 0.0
    %262 = vmatmul.mubr.f32.gmra.mrb[0].mxu0 %v91
    %v263 = vpop.f32.mrb[0].mxu0
    %v264 = vadd.f32 %v74, %v263
    %v265 = vpop.f32.mrb[0].mxu0
    %v266 = vadd.f32 %v78, %v265
    %267 = vmatprep.mubr.f32.mxu0 0.0
    %268 = vmatmul.mubr.f32.gmra.mrb[0].mxu0 %v94
    %v269 = vpop.f32.mrb[0].mxu0
    %v270 = vadd.f32 %v74, %v269
    %v271 = vpop.f32.mrb[0].mxu0
    %v272 = vadd.f32 %v78, %v271
    %273 = vdwg.mxu0
    %v274 = vmax.f32 %v163, 0.0
    %v275 = vmax.f32 %v165, 0.0
    %v276 = vmax.f32 %v252, 0.0
    %v277 = vmax.f32 %v254, 0.0
    %v278 = vmax.f32 %v169, 0.0
    %v279 = vmax.f32 %v171, 0.0
    %v280 = vmax.f32 %v258, 0.0
    %v281 = vmax.f32 %v260, 0.0
    %v282 = vmax.f32 %v175, 0.0
    %v283 = vmax.f32 %v177, 0.0
    %v284 = vmax.f32 %v264, 0.0
    %v285 = vmax.f32 %v266, 0.0
    %v286 = vmax.f32 %v181, 0.0
    %v287 = vmax.f32 %v183, 0.0
    %v288 = vmax.f32 %v270, 0.0
    %v289 = vmax.f32 %v272, 0.0
    %v290 = vld [vmem:[#allocation5] sm:$0xff]
    %v291 = vld [vmem:[#allocation5 + $0x8] sm:$0xff]
    %v292 = vld [vmem:[#allocation5 + $0x10] sm:$0xff]
    %v293 = vld [vmem:[#allocation5 + $0x18] sm:$0xff]
    %v294 = vld [vmem:[#allocation5 + $0x20] sm:$0xff]
    %v295 = vld [vmem:[#allocation5 + $0x28] sm:$0xff]
    %v296 = vld [vmem:[#allocation5 + $0x30] sm:$0xff]
    %v297 = vld [vmem:[#allocation5 + $0x38] sm:$0xff]
    %v298 = vld [vmem:[#allocation5 + $0x40] sm:$0xff]
    %v299 = vld [vmem:[#allocation5 + $0x48] sm:$0xff]
    %v300 = vld [vmem:[#allocation5 + $0x50] sm:$0xff]
    %v301 = vld [vmem:[#allocation5 + $0x58] sm:$0xff]
    %v302 = vld [vmem:[#allocation5 + $0x60] sm:$0xff]
    %v303 = vld [vmem:[#allocation5 + $0x68] sm:$0xff]
    %v304 = vld [vmem:[#allocation5 + $0x70] sm:$0xff]
    %v305 = vld [vmem:[#allocation5 + $0x78] sm:$0xff]
    %v306 = vld [vmem:[#allocation5 + $0x80] sm:$0xff]
    %v307 = vld [vmem:[#allocation5 + $0x88] sm:$0xff]
    %v308 = vld [vmem:[#allocation5 + $0x90] sm:$0xff]
    %v309 = vld [vmem:[#allocation5 + $0x98] sm:$0xff]
    %v310 = vld [vmem:[#allocation5 + $0xa0] sm:$0xff]
    %v311 = vld [vmem:[#allocation5 + $0xa8] sm:$0xff]
    %v312 = vld [vmem:[#allocation5 + $0xb0] sm:$0xff]
    %v313 = vld [vmem:[#allocation5 + $0xb8] sm:$0xff]
    %v314 = vld [vmem:[#allocation5 + $0xc0] sm:$0xff]
    %v315 = vld [vmem:[#allocation5 + $0xc8] sm:$0xff]
    %v316 = vld [vmem:[#allocation5 + $0xd0] sm:$0xff]
    %v317 = vld [vmem:[#allocation5 + $0xd8] sm:$0xff]
    %v318 = vld [vmem:[#allocation5 + $0xe0] sm:$0xff]
    %v319 = vld [vmem:[#allocation5 + $0xe8] sm:$0xff]
    %v320 = vld [vmem:[#allocation5 + $0xf0] sm:$0xff]
    %v321 = vld [vmem:[#allocation5 + $0xf8] sm:$0xff]
    %v322 = vld [vmem:[#allocation5 + $0x100] sm:$0xff]
    %v323 = vld [vmem:[#allocation5 + $0x108] sm:$0xff]
    %v324 = vld [vmem:[#allocation5 + $0x110] sm:$0xff]
    %v325 = vld [vmem:[#allocation5 + $0x118] sm:$0xff]
    %v326 = vld [vmem:[#allocation5 + $0x120] sm:$0xff]
    %v327 = vld [vmem:[#allocation5 + $0x128] sm:$0xff]
    %v328 = vld [vmem:[#allocation5 + $0x130] sm:$0xff]
    %v329 = vld [vmem:[#allocation5 + $0x138] sm:$0xff]
    %v330 = vld [vmem:[#allocation5 + $0x140] sm:$0xff]
    %v331 = vld [vmem:[#allocation5 + $0x148] sm:$0xff]
    %v332 = vld [vmem:[#allocation5 + $0x150] sm:$0xff]
    %v333 = vld [vmem:[#allocation5 + $0x158] sm:$0xff]
    %v334 = vld [vmem:[#allocation5 + $0x160] sm:$0xff]
    %v335 = vld [vmem:[#allocation5 + $0x168] sm:$0xff]
    %v336 = vld [vmem:[#allocation5 + $0x170] sm:$0xff]
    %v337 = vld [vmem:[#allocation5 + $0x178] sm:$0xff]
    %v338 = vld [vmem:[#allocation5 + $0x180] sm:$0xff]
    %v339 = vld [vmem:[#allocation5 + $0x188] sm:$0xff]
    %v340 = vld [vmem:[#allocation5 + $0x190] sm:$0xff]
    %v341 = vld [vmem:[#allocation5 + $0x198] sm:$0xff]
    %v342 = vld [vmem:[#allocation5 + $0x1a0] sm:$0xff]
    %v343 = vld [vmem:[#allocation5 + $0x1a8] sm:$0xff]
    %v344 = vld [vmem:[#allocation5 + $0x1b0] sm:$0xff]
    %v345 = vld [vmem:[#allocation5 + $0x1b8] sm:$0xff]
    %v346 = vld [vmem:[#allocation5 + $0x1c0] sm:$0xff]
    %v347 = vld [vmem:[#allocation5 + $0x1c8] sm:$0xff]
    %v348 = vld [vmem:[#allocation5 + $0x1d0] sm:$0xff]
    %v349 = vld [vmem:[#allocation5 + $0x1d8] sm:$0xff]
    %v350 = vld [vmem:[#allocation5 + $0x1e0] sm:$0xff]
    %v351 = vld [vmem:[#allocation5 + $0x1e8] sm:$0xff]
    %v352 = vld [vmem:[#allocation5 + $0x1f0] sm:$0xff]
    %v353 = vld [vmem:[#allocation5 + $0x1f8] sm:$0xff]
    %v354 = vld [vmem:[%s4] sm:$0x1]
    %v356 = vlaneseq
    %v357 = vshrl.u32 %v356, 7
    %v358 = vsub.s32 0, %v357
    %v359 = vrot.slane %v354, %v358
    %361 = vmatprep.subr.mxu0 0.0
    %362 = vmatpush1.msra.mxu0 %v290
    %363 = vmatprep.subr.mxu0 0.0
    %364 = vmatpush1.msra.mxu0 %v291
    %365 = vmatprep.subr.mxu0 0.0
    %366 = vmatpush1.msra.mxu0 %v292
    %367 = vmatprep.subr.mxu0 0.0
    %368 = vmatpush1.msra.mxu0 %v293
    %369 = vmatprep.subr.mxu0 0.0
    %370 = vmatpush1.msra.mxu0 %v294
    %371 = vmatprep.subr.mxu0 0.0
    %372 = vmatpush1.msra.mxu0 %v295
    %373 = vmatprep.subr.mxu0 0.0
    %374 = vmatpush1.msra.mxu0 %v296
    %375 = vmatprep.subr.mxu0 0.0
    %376 = vmatpush1.msra.mxu0 %v297
    %377 = vmatprep.subr.mxu0 0.0
    %378 = vmatpush1.msra.mxu0 %v298
    %379 = vmatprep.subr.mxu0 0.0
    %380 = vmatpush1.msra.mxu0 %v299
    %381 = vmatprep.subr.mxu0 0.0
    %382 = vmatpush1.msra.mxu0 %v300
    %383 = vmatprep.subr.mxu0 0.0
    %384 = vmatpush1.msra.mxu0 %v301
    %385 = vmatprep.subr.mxu0 0.0
    %386 = vmatpush1.msra.mxu0 %v302
    %387 = vmatprep.subr.mxu0 0.0
    %388 = vmatpush1.msra.mxu0 %v303
    %389 = vmatprep.subr.mxu0 0.0
    %390 = vmatpush1.msra.mxu0 %v304
    %391 = vmatprep.subr.mxu0 0.0
    %392 = vmatpush1.msra.mxu0 %v305
    %393 = vmatprep.subr.mxu0 0.0
    %394 = vmatpush1.msra.mxu0 %v306
    %395 = vmatprep.subr.mxu0 0.0
    %396 = vmatpush1.msra.mxu0 %v307
    %397 = vmatprep.subr.mxu0 0.0
    %398 = vmatpush1.msra.mxu0 %v308
    %399 = vmatprep.subr.mxu0 0.0
    %400 = vmatpush1.msra.mxu0 %v309
    %401 = vmatprep.subr.mxu0 0.0
    %402 = vmatpush1.msra.mxu0 %v310
    %403 = vmatprep.subr.mxu0 0.0
    %404 = vmatpush1.msra.mxu0 %v311
    %405 = vmatprep.subr.mxu0 0.0
    %406 = vmatpush1.msra.mxu0 %v312
    %407 = vmatprep.subr.mxu0 0.0
    %408 = vmatpush1.msra.mxu0 %v313
    %409 = vmatprep.subr.mxu0 0.0
    %410 = vmatpush1.msra.mxu0 %v314
    %411 = vmatprep.subr.mxu0 0.0
    %412 = vmatpush1.msra.mxu0 %v315
    %413 = vmatprep.subr.mxu0 0.0
    %414 = vmatpush1.msra.mxu0 %v316
    %415 = vmatprep.subr.mxu0 0.0
    %416 = vmatpush1.msra.mxu0 %v317
    %417 = vmatprep.subr.mxu0 0.0
    %418 = vmatpush1.msra.mxu0 %v318
    %419 = vmatprep.subr.mxu0 0.0
    %420 = vmatpush1.msra.mxu0 %v319
    %421 = vmatprep.subr.mxu0 0.0
    %422 = vmatpush1.msra.mxu0 %v320
    %423 = vmatprep.subr.mxu0 0.0
    %424 = vmatpush1.msra.mxu0 %v321
    %425 = vmatprep.mubr.f32.mxu0 %v275
    %426 = vmatmul.mubr.f32.gmra.mrb[0].mxu0 %v274
    %v427 = vpop.f32.mrb[0].mxu0
    %v428 = vadd.f32 %v359, %v427
    %v429 = vpop.f32.mrb[0].mxu0
    %430 = vmatprep.mubr.f32.mxu0 %v279
    %431 = vmatmul.mubr.f32.gmra.mrb[0].mxu0 %v278
    %v432 = vpop.f32.mrb[0].mxu0
    %v433 = vadd.f32 %v359, %v432
    %v434 = vpop.f32.mrb[0].mxu0
    %435 = vmatprep.mubr.f32.mxu0 %v283
    %436 = vmatmul.mubr.f32.gmra.mrb[0].mxu0 %v282
    %v437 = vpop.f32.mrb[0].mxu0
    %v438 = vadd.f32 %v359, %v437
    %v439 = vpop.f32.mrb[0].mxu0
    %440 = vmatprep.mubr.f32.mxu0 %v287
    %441 = vmatmul.mubr.f32.gmra.mrb[0].mxu0 %v286
    %v442 = vpop.f32.mrb[0].mxu0
    %v443 = vadd.f32 %v359, %v442
    %v444 = vpop.f32.mrb[0].mxu0
    %445 = vdwg.mxu0
    %446 = vmatprep.subr.mxu0 0.0
    %447 = vmatpush1.msra.mxu0 %v322
    %448 = vmatprep.subr.mxu0 0.0
    %449 = vmatpush1.msra.mxu0 %v323
    %450 = vmatprep.subr.mxu0 0.0
    %451 = vmatpush1.msra.mxu0 %v324
    %452 = vmatprep.subr.mxu0 0.0
    %453 = vmatpush1.msra.mxu0 %v325
    %454 = vmatprep.subr.mxu0 0.0
    %455 = vmatpush1.msra.mxu0 %v326
    %456 = vmatprep.subr.mxu0 0.0
    %457 = vmatpush1.msra.mxu0 %v327
    %458 = vmatprep.subr.mxu0 0.0
    %459 = vmatpush1.msra.mxu0 %v328
    %460 = vmatprep.subr.mxu0 0.0
    %461 = vmatpush1.msra.mxu0 %v329
    %462 = vmatprep.subr.mxu0 0.0
    %463 = vmatpush1.msra.mxu0 %v330
    %464 = vmatprep.subr.mxu0 0.0
    %465 = vmatpush1.msra.mxu0 %v331
    %466 = vmatprep.subr.mxu0 0.0
    %467 = vmatpush1.msra.mxu0 %v332
    %468 = vmatprep.subr.mxu0 0.0
    %469 = vmatpush1.msra.mxu0 %v333
    %470 = vmatprep.subr.mxu0 0.0
    %471 = vmatpush1.msra.mxu0 %v334
    %472 = vmatprep.subr.mxu0 0.0
    %473 = vmatpush1.msra.mxu0 %v335
    %474 = vmatprep.subr.mxu0 0.0
    %475 = vmatpush1.msra.mxu0 %v336
    %476 = vmatprep.subr.mxu0 0.0
    %477 = vmatpush1.msra.mxu0 %v337
    %478 = vmatprep.subr.mxu0 0.0
    %479 = vmatpush1.msra.mxu0 %v338
    %480 = vmatprep.subr.mxu0 0.0
    %481 = vmatpush1.msra.mxu0 %v339
    %482 = vmatprep.subr.mxu0 0.0
    %483 = vmatpush1.msra.mxu0 %v340
    %484 = vmatprep.subr.mxu0 0.0
    %485 = vmatpush1.msra.mxu0 %v341
    %486 = vmatprep.subr.mxu0 0.0
    %487 = vmatpush1.msra.mxu0 %v342
    %488 = vmatprep.subr.mxu0 0.0
    %489 = vmatpush1.msra.mxu0 %v343
    %490 = vmatprep.subr.mxu0 0.0
    %491 = vmatpush1.msra.mxu0 %v344
    %492 = vmatprep.subr.mxu0 0.0
    %493 = vmatpush1.msra.mxu0 %v345
    %494 = vmatprep.subr.mxu0 0.0
    %495 = vmatpush1.msra.mxu0 %v346
    %496 = vmatprep.subr.mxu0 0.0
    %497 = vmatpush1.msra.mxu0 %v347
    %498 = vmatprep.subr.mxu0 0.0
    %499 = vmatpush1.msra.mxu0 %v348
    %500 = vmatprep.subr.mxu0 0.0
    %501 = vmatpush1.msra.mxu0 %v349
    %502 = vmatprep.subr.mxu0 0.0
    %503 = vmatpush1.msra.mxu0 %v350
    %504 = vmatprep.subr.mxu0 0.0
    %505 = vmatpush1.msra.mxu0 %v351
    %506 = vmatprep.subr.mxu0 0.0
    %507 = vmatpush1.msra.mxu0 %v352
    %508 = vmatprep.subr.mxu0 0.0
    %509 = vmatpush1.msra.mxu0 %v353
    %510 = vmatprep.mubr.f32.mxu0 %v277
    %511 = vmatmul.mubr.f32.gmra.mrb[0].mxu0 %v276
    %v512 = vpop.f32.mrb[0].mxu0
    %v513 = vadd.f32 %v428, %v512
    %v514 = vpop.f32.mrb[0].mxu0
    %515 = vmatprep.mubr.f32.mxu0 %v281
    %516 = vmatmul.mubr.f32.gmra.mrb[0].mxu0 %v280
    %v517 = vpop.f32.mrb[0].mxu0
    %v518 = vadd.f32 %v433, %v517
    %v519 = vpop.f32.mrb[0].mxu0
    %520 = vmatprep.mubr.f32.mxu0 %v285
    %521 = vmatmul.mubr.f32.gmra.mrb[0].mxu0 %v284
    %v522 = vpop.f32.mrb[0].mxu0
    %v523 = vadd.f32 %v438, %v522
    %v524 = vpop.f32.mrb[0].mxu0
    %525 = vmatprep.mubr.f32.mxu0 %v289
    %526 = vmatmul.mubr.f32.gmra.mrb[0].mxu0 %v288
    %v527 = vpop.f32.mrb[0].mxu0
    %v528 = vadd.f32 %v443, %v527
    %v529 = vpop.f32.mrb[0].mxu0
    %530 = vdwg.mxu0
    %531 = vst [vmem:[#allocation7] sm:$0xff] %v513
    %532 = vst [vmem:[#allocation7 + $0x8] sm:$0xff] %v518
    %533 = vst [vmem:[#allocation7 + $0x10] sm:$0xff] %v523
    %534 = vst [vmem:[#allocation7 + $0x18] sm:$0xff] %v528
    // Predicated region
    $region30: #{tpu_custom_call.1} parent=1 // pred_check
      _
    $region31: #{tpu_custom_call.1} parent=1 // pred_check_branch
      %536 = sbr.rel (0) target = $region33
    $region32: #{tpu_custom_call.1} parent=1 // pred_region
      %s538 = ssub.s32 512, 512
      %539 = vsyncadd [#allocation4], %s538
      %s540 = sshll.u32 [#allocation7], 4
      %s541 = int_to_ptr.vmem [resolvable:$true] %s540
      %546 = dma.vmem_to_hbm [thread:$0]  %s541, 512, %s5, [#allocation4], 128, 128, 8
    $region33: #{tpu_custom_call.1} parent=1 // pred_fallthru
      _
    // Predicated region
    $region34: #{tpu_custom_call.1} parent=1 // pred_check
      _
    $region35: #{tpu_custom_call.1} parent=1 // pred_check_branch
      %548 = sbr.rel (0) target = $region37
    $region36: #{tpu_custom_call.1} parent=1 // pred_region
      %549 = dma.done [#allocation4], 512
    $region37: #{tpu_custom_call.1} parent=1 // pred_fallthru
      _
    %550 = vsyncpa [#allocation3], 1
    %551 = vsyncpa [#allocation6], 1
    %552 = vsyncpa [#allocation4], 1

</llo_original>
